<compile_context>
chip_gen: v6e
topology: v6e:2x2x1
jax: 0.10.0
libtpu: 0.0.40
codegen_flags: <defaults>
</compile_context>

<pallas_src>
import inspect

import jax
import jax.numpy as jnp
from jax.experimental import pallas as pl
from jax.experimental.pallas import tpu as pltpu

_LANE = 128

try:
    _HAS_BUFFERED = (hasattr(pl, "Buffered") and
                     "pipeline_mode" in inspect.signature(pl.BlockSpec).parameters)
except (ValueError, TypeError):
    _HAS_BUFFERED = hasattr(pl, "Buffered")


def _round_up(n, m):
    return ((n + m - 1) // m) * m


# Per-generation fallbacks (physical VMEM refined via pltpu.get_tpu_info()).
_GEN_TABLE = {
    "v5e":     dict(vmem=128 << 20, default_scoped=16 << 20, cores=1, wide_lane=128),
    "v6e":     dict(vmem=128 << 20, default_scoped=32 << 20, cores=1, wide_lane=256),
    "v7x":     dict(vmem=64 << 20,  default_scoped=32 << 20, cores=2, wide_lane=256),
    "unknown": dict(vmem=64 << 20,  default_scoped=16 << 20, cores=1, wide_lane=128),
}


def _tpu_generation_info():
    gen = "unknown"
    try:
        kind = jax.devices()[0].device_kind.lower()
        if "v7" in kind:
            gen = "v7x"
        elif "v6" in kind:
            gen = "v6e"
        elif "v5" in kind:
            gen = "v5e"          # v5e / "v5 lite"; other v5 treated conservatively
    except Exception:
        pass
    info = dict(_GEN_TABLE[gen])
    info["gen"] = gen
    try:  # refine physical VMEM capacity from the runtime when available
        info["vmem"] = int(pltpu.get_tpu_info().vmem_capacity_bytes)
    except Exception:
        pass
    return info


def _pad_feature(d, wide_lane):
    """Lane-pad a feature dim: 128 for small dims, MXU-width multiple above."""
    if d <= _LANE:
        return _LANE
    return _round_up(d, wide_lane)


def _make_mlp_kernel(num_layers, activation, compute_dtype):
    """Fused kernel: (x, W0^T, b0, ..., W_{L-1}^T, b_{L-1}, out)."""
    if activation == "tanh":
        act = jnp.tanh
    else:
        act = lambda v: jnp.maximum(v, 0.0)  # relu

    def kernel(x_ref, *refs):
        o_ref = refs[-1]
        param_refs = refs[:-1]   # alternating (padded W^T, padded bias)

        h = x_ref[...]
        for l in range(num_layers):
            w = param_refs[2 * l][...]        # [in_p, out_p], compute_dtype
            b = param_refs[2 * l + 1][...]    # [1, out_p], f32
            h = jnp.dot(h.astype(compute_dtype), w,
                        preferred_element_type=jnp.float32) + b
            if l < num_layers - 1:
                h = act(h)                     # f32 elementwise (v5e-friendly)
        o_ref[...] = h.astype(o_ref.dtype)

    return kernel


def pack_mlp_params(params, compute_dtype, wide_lane):
    """Host-side packing (transpose + cast + zero-pad), done once per param set."""
    flat_args, shapes = [], []
    for (w, b) in params:
        o, i = w.shape
        i_p = _pad_feature(i, wide_lane)
        o_p = _pad_feature(o, wide_lane)
        w_t = jnp.pad(jnp.asarray(w).T.astype(compute_dtype),
                      ((0, i_p - i), (0, o_p - o)))
        b2 = jnp.pad(jnp.asarray(b).astype(jnp.float32), (0, o_p - o)).reshape(1, o_p)
        flat_args += [w_t, b2]
        shapes.append((i_p, o_p))
    return flat_args, shapes


def build_mlp_forward(params, activation="relu", compute_dtype=None,
                      batch_tile=None):
    """Pack weights once and return a jitted forward function x -> y.

    params: list of (W, b) with W: [out_f, in_f], b: [out_f] (PyTorch layout).
    """
    info = _tpu_generation_info()
    num_layers = len(params)
    out_f = params[-1][0].shape[0]
    max_f = max(max(w.shape) for (w, _) in params)

    if compute_dtype is None:
        # bf16 MXU operands pay off on v6e/v7x once dims are non-trivial;
        # tiny Lotka-Volterra-sized MLPs stay exact f32.
        use_bf16 = info["gen"] in ("v6e", "v7x") and max_f >= 256
        compute_dtype = jnp.bfloat16 if use_bf16 else jnp.float32
    compute_dtype = jnp.dtype(compute_dtype)
    is_bf16 = compute_dtype == jnp.dtype(jnp.bfloat16)

    flat_args, shapes = pack_mlp_params(params, compute_dtype, info["wide_lane"])
    in_p = shapes[0][0]
    out_p = shapes[-1][1]
    max_feat_p = max(max(s) for s in shapes)

    # bf16 packs 16 rows per vreg -> align the batch (and tile) to 16.
    sublane = 16 if is_bf16 else 8
    x_item = compute_dtype.itemsize
    out_item = 4  # f32 output

    param_bytes = sum(a.size * a.dtype.itemsize for a in flat_args)
    resident_param_bytes = param_bytes if _HAS_BUFFERED else 2 * param_bytes

    # TODO(synk): if resident_param_bytes ever approaches ~0.75*VMEM (very large
    # hidden sizes / layer counts on v7x's 64 MiB), stream layer weights with
    # pltpu.emit_pipeline instead of keeping every layer resident.

    kernel = _make_mlp_kernel(num_layers, activation, compute_dtype)

    def _param_spec(shape):
        if _HAS_BUFFERED:
            # Constant index_map -> fetched once; single-buffer to halve footprint.
            return pl.BlockSpec(shape, lambda gi: (0, 0),
                                pipeline_mode=pl.Buffered(1))
        return pl.BlockSpec(shape, lambda gi: (0, 0))

    param_specs = [_param_spec(a.shape) for a in flat_args]

    @jax.jit
    def _forward(x, *flat):
        B, in_f_x = x.shape
        B_p = _round_up(max(B, sublane), sublane)

        # --- batch tile sized from VMEM headroom ----------------------------
        per_row = (2 * (in_p * x_item + out_p * out_item)   # pipelined x/out tiles
                   + 2 * max_feat_p * 4)                     # f32 intermediates
        budget = int(0.70 * info["vmem"])
        headroom = max(budget - resident_param_bytes, per_row * sublane)
        tb_max = max((headroom // per_row) // sublane * sublane, sublane)
        tb_max = min(tb_max, 2048)

        if batch_tile is not None:
            tb = min(_round_up(batch_tile, sublane), B_p)
        else:
            tb = min(B_p, tb_max)
            # Split the grid only when a second TensorCore exists and there is
            # enough work to amortize the per-step overhead; on single-TC
            # v5e/v6e the grid is a sequential loop, so no forced split.
            if info["cores"] >= 2 and B_p >= 256:
                tb = min(tb, _round_up(-(-B_p // info["cores"]), sublane))

        B_pad = _round_up(B_p, tb)          # avoid partial trailing blocks
        grid = (B_pad // tb,)

        x_p = jnp.pad(x.astype(compute_dtype),
                      ((0, B_pad - B), (0, in_p - in_f_x)))

        # --- VMEM limit: raise above the generation default only if needed ---
        resident = (resident_param_bytes
                    + 2 * tb * (in_p * x_item + out_p * out_item)
                    + 2 * tb * max_feat_p * 4)
        vmem_limit = None
        if resident > info["default_scoped"]:
            vmem_limit = min(max(int(resident * 3 // 2), resident),
                             int(0.90 * info["vmem"]))

        out_padded = pl.pallas_call(
            kernel,
            out_shape=jax.ShapeDtypeStruct((B_pad, out_p), jnp.float32),
            grid=grid,
            in_specs=[pl.BlockSpec((tb, in_p), lambda gi: (gi, 0))] + param_specs,
            out_specs=pl.BlockSpec((tb, out_p), lambda gi: (gi, 0)),
            compiler_params=pltpu.CompilerParams(
                dimension_semantics=("parallel",),
                vmem_limit_bytes=vmem_limit,
            ),
        )(x_p, *flat)

        return out_padded[:B, :out_f]

    def forward(x):
        return _forward(jnp.asarray(x), *flat_args)

    return forward


def mlp_forward(x, params, activation="relu", compute_dtype=None,
                batch_tile=None):
    """One-shot convenience wrapper.  Prefer build_mlp_forward() on a hot path
    so the weight packing is cached across calls."""
    fwd = build_mlp_forward(params, activation=activation,
                            compute_dtype=compute_dtype, batch_tile=batch_tile)
    return fwd(x)


def init_mlp_params(key, input_size, output_size, nlayers, hidden_size,
                    initialisation=None):
    """Deterministic parameter init mirroring the module's layer shapes."""
    params = []
    keys = jax.random.split(key, nlayers + 1)

    # First layer (PyTorch default init ~ U(-1/sqrt(fan_in), 1/sqrt(fan_in)))
    bound = 1.0 / (input_size ** 0.5)
    w0 = jax.random.uniform(keys[0], (hidden_size, input_size),
                            minval=-bound, maxval=bound, dtype=jnp.float32)
    b0 = jax.random.uniform(keys[1], (hidden_size,),
                            minval=-bound, maxval=bound, dtype=jnp.float32)
    params.append((w0, b0))

    # Hidden layers: N(0, 0.01) weights, zero bias
    if nlayers > 2:
        for i in range(1, nlayers - 1):
            w = 0.01 * jax.random.normal(keys[i + 1], (hidden_size, hidden_size),
                                         dtype=jnp.float32)
            b = jnp.zeros((hidden_size,), dtype=jnp.float32)
            params.append((w, b))

    # Output layer
    if initialisation == "zeros":
        w_out = jnp.zeros((output_size, hidden_size), dtype=jnp.float32)
    else:
        w_out = 0.01 * jax.random.normal(keys[-1], (output_size, hidden_size),
                                         dtype=jnp.float32)
    b_out = jnp.zeros((output_size,), dtype=jnp.float32)
    params.append((w_out, b_out))
    return params


def mlp_reference(x, params, activation="relu"):
    """Pure-JAX reference of the PyTorch forward for validation."""
    act = jnp.tanh if activation == "tanh" else jax.nn.relu
    h = x
    for l, (w, b) in enumerate(params):
        h = h @ w.T + b
        if l < len(params) - 1:
            h = act(h)
    return h


if __name__ == "__main__":
    # Small shapes consistent with the Lotka-Volterra meta-model MLP.
    batch = 8
    input_size = 4
    hidden_size = 32
    output_size = 2
    nlayers = 3
    activation = "tanh"

    key = jax.random.PRNGKey(0)
    kx, kp = jax.random.split(key)

    x = jax.random.normal(kx, (batch, input_size), dtype=jnp.float32)
    params = init_mlp_params(kp, input_size, output_size, nlayers, hidden_size,
                             initialisation=None)
    ref = mlp_reference(x, params, activation=activation)

    # Auto path (f32 operands at these tiny shapes -> exact vs reference).
    # Weight packing is done once in build_mlp_forward and cached in the closure.
    fwd = build_mlp_forward(params, activation=activation)
    out = jax.block_until_ready(fwd(x))
    assert out.shape == (batch, output_size)
    assert jnp.allclose(out, ref, atol=1e-5, rtol=1e-5), "f32 path mismatch"

    # Explicit bf16-operand path (bf16 MXU operands, f32 accumulation +
    # f32 activations; batch padded to 16 sublanes).
    fwd_bf16 = build_mlp_forward(params, activation=activation,
                                 compute_dtype=jnp.bfloat16)
    out_bf16 = jax.block_until_ready(fwd_bf16(x))
    assert out_bf16.shape == (batch, output_size)
    assert jnp.allclose(out_bf16, ref, atol=2e-2, rtol=2e-2), "bf16 path mismatch"

    print("KERNEL_OK")
</pallas_src>

<mosaic_0001>
module attributes {stable_mosaic.version = 11 : i64} {
  func.func @kernel(%arg0: i32, %arg1: memref<8x128xf32, #tpu.memory_space<vmem>>, %arg2: memref<128x128xf32, #tpu.memory_space<vmem>>, %arg3: memref<1x128xf32, #tpu.memory_space<vmem>>, %arg4: memref<128x128xf32, #tpu.memory_space<vmem>>, %arg5: memref<1x128xf32, #tpu.memory_space<vmem>>, %arg6: memref<128x128xf32, #tpu.memory_space<vmem>>, %arg7: memref<1x128xf32, #tpu.memory_space<vmem>>, %arg8: memref<8x128xf32, #tpu.memory_space<vmem>>) attributes {dimension_semantics = [#tpu.dimension_semantics<parallel>], iteration_bounds = array<i64: 1>, scalar_prefetch = 0 : i64, scratch_operands = 0 : i64, tpu.core_type = #tpu.core_type<tc>, window_params = [{transform_indices = @transform_0, window_bounds = array<i64: 8, 128>}, {pipeline_mode = #tpu.pipeline_mode<synchronous>, transform_indices = @transform_1, window_bounds = array<i64: 128, 128>}, {pipeline_mode = #tpu.pipeline_mode<synchronous>, transform_indices = @transform_2, window_bounds = array<i64: 1, 128>}, {pipeline_mode = #tpu.pipeline_mode<synchronous>, transform_indices = @transform_3, window_bounds = array<i64: 128, 128>}, {pipeline_mode = #tpu.pipeline_mode<synchronous>, transform_indices = @transform_4, window_bounds = array<i64: 1, 128>}, {pipeline_mode = #tpu.pipeline_mode<synchronous>, transform_indices = @transform_5, window_bounds = array<i64: 128, 128>}, {pipeline_mode = #tpu.pipeline_mode<synchronous>, transform_indices = @transform_6, window_bounds = array<i64: 1, 128>}, {transform_indices = @transform_7, window_bounds = array<i64: 8, 128>}]} {
    %c0 = arith.constant 0 : index
    %c0_0 = arith.constant 0 : index
    %0 = vector.load %arg1[%c0, %c0_0] : memref<8x128xf32, #tpu.memory_space<vmem>>, vector<8x128xf32>
    %c0_1 = arith.constant 0 : index
    %c0_2 = arith.constant 0 : index
    %1 = vector.load %arg2[%c0_1, %c0_2] : memref<128x128xf32, #tpu.memory_space<vmem>>, vector<128x128xf32>
    %c0_3 = arith.constant 0 : index
    %c0_4 = arith.constant 0 : index
    %2 = vector.load %arg3[%c0_3, %c0_4] : memref<1x128xf32, #tpu.memory_space<vmem>>, vector<1x128xf32>
    %cst = arith.constant dense<0.000000e+00> : vector<8x128xf32>
    %3 = tpu.matmul %0, %1, %cst {dimension_numbers = #tpu.dot_dimension_numbers<[1], [0], [0], [1], [0, 0, 1, 1], [], []>} : vector<8x128xf32>, vector<128x128xf32>, vector<8x128xf32> -> vector<8x128xf32>
    %4 = vector.broadcast %2 : vector<1x128xf32> to vector<8x128xf32>
    %5 = arith.addf %3, %4 : vector<8x128xf32>
    %6 = math.tanh %5 : vector<8x128xf32>
    %c0_5 = arith.constant 0 : index
    %c0_6 = arith.constant 0 : index
    %7 = vector.load %arg4[%c0_5, %c0_6] : memref<128x128xf32, #tpu.memory_space<vmem>>, vector<128x128xf32>
    %c0_7 = arith.constant 0 : index
    %c0_8 = arith.constant 0 : index
    %8 = vector.load %arg5[%c0_7, %c0_8] : memref<1x128xf32, #tpu.memory_space<vmem>>, vector<1x128xf32>
    %cst_9 = arith.constant dense<0.000000e+00> : vector<8x128xf32>
    %9 = tpu.matmul %6, %7, %cst_9 {dimension_numbers = #tpu.dot_dimension_numbers<[1], [0], [0], [1], [0, 0, 1, 1], [], []>} : vector<8x128xf32>, vector<128x128xf32>, vector<8x128xf32> -> vector<8x128xf32>
    %10 = vector.broadcast %8 : vector<1x128xf32> to vector<8x128xf32>
    %11 = arith.addf %9, %10 : vector<8x128xf32>
    %12 = math.tanh %11 : vector<8x128xf32>
    %c0_10 = arith.constant 0 : index
    %c0_11 = arith.constant 0 : index
    %13 = vector.load %arg6[%c0_10, %c0_11] : memref<128x128xf32, #tpu.memory_space<vmem>>, vector<128x128xf32>
    %c0_12 = arith.constant 0 : index
    %c0_13 = arith.constant 0 : index
    %14 = vector.load %arg7[%c0_12, %c0_13] : memref<1x128xf32, #tpu.memory_space<vmem>>, vector<1x128xf32>
    %cst_14 = arith.constant dense<0.000000e+00> : vector<8x128xf32>
    %15 = tpu.matmul %12, %13, %cst_14 {dimension_numbers = #tpu.dot_dimension_numbers<[1], [0], [0], [1], [0, 0, 1, 1], [], []>} : vector<8x128xf32>, vector<128x128xf32>, vector<8x128xf32> -> vector<8x128xf32>
    %16 = vector.broadcast %14 : vector<1x128xf32> to vector<8x128xf32>
    %17 = arith.addf %15, %16 : vector<8x128xf32>
    %c0_15 = arith.constant 0 : index
    %c0_16 = arith.constant 0 : index
    %18 = vector.load %arg8[%c0_15, %c0_16] : memref<8x128xf32, #tpu.memory_space<vmem>>, vector<8x128xf32>
    tpu.vector_store %arg8[%c0_15, %c0_16], %17 {strides = array<i32>} : memref<8x128xf32, #tpu.memory_space<vmem>>, vector<8x128xf32>,
    return
  }
  func.func @transform_0(%arg0: i32) -> (i32, i32) {
    %c0_i32 = arith.constant 0 : i32
    %c0_i32_0 = arith.constant 0 : i32
    return %arg0, %c0_i32 : i32, i32
  }
  func.func @transform_1(%arg0: i32) -> (i32, i32) {
    %c0_i32 = arith.constant 0 : i32
    %c0_i32_0 = arith.constant 0 : i32
    %c0_i32_1 = arith.constant 0 : i32
    return %c0_i32, %c0_i32_0 : i32, i32
  }
  func.func @transform_2(%arg0: i32) -> (i32, i32) {
    %c0_i32 = arith.constant 0 : i32
    %c0_i32_0 = arith.constant 0 : i32
    %c0_i32_1 = arith.constant 0 : i32
    return %c0_i32, %c0_i32_0 : i32, i32
  }
  func.func @transform_3(%arg0: i32) -> (i32, i32) {
    %c0_i32 = arith.constant 0 : i32
    %c0_i32_0 = arith.constant 0 : i32
    %c0_i32_1 = arith.constant 0 : i32
    return %c0_i32, %c0_i32_0 : i32, i32
  }
  func.func @transform_4(%arg0: i32) -> (i32, i32) {
    %c0_i32 = arith.constant 0 : i32
    %c0_i32_0 = arith.constant 0 : i32
    %c0_i32_1 = arith.constant 0 : i32
    return %c0_i32, %c0_i32_0 : i32, i32
  }
  func.func @transform_5(%arg0: i32) -> (i32, i32) {
    %c0_i32 = arith.constant 0 : i32
    %c0_i32_0 = arith.constant 0 : i32
    %c0_i32_1 = arith.constant 0 : i32
    return %c0_i32, %c0_i32_0 : i32, i32
  }
  func.func @transform_6(%arg0: i32) -> (i32, i32) {
    %c0_i32 = arith.constant 0 : i32
    %c0_i32_0 = arith.constant 0 : i32
    %c0_i32_1 = arith.constant 0 : i32
    return %c0_i32, %c0_i32_0 : i32, i32
  }
  func.func @transform_7(%arg0: i32) -> (i32, i32) {
    %c0_i32 = arith.constant 0 : i32
    %c0_i32_0 = arith.constant 0 : i32
    return %arg0, %c0_i32 : i32, i32
  }
}

</mosaic_0001>

<llo_original>
// kernel: _forward.1
$region0: #{_forward.1}
  #allocation0 [shape = 'u32[]', space=smem, size = 0x4, offset = 0x4, fixed_abs, tag = 'smem constant byte address 0x4 - core index']
  #allocation1 [shape = 'u32[144,128]{1,0:T(1,128)}', space=vmem, size = 0x12000, scoped, tag = 'internal scratch']
  %s0 = inlined_call_operand.vmem [shape: f32[8,128], index: 0, kind: input, shape index: {}]
  %s1 = inlined_call_operand.hbm [shape: f32[128,128], index: 1, kind: input, shape index: {}]
  %s2 = inlined_call_operand.vmem [shape: f32[1,128], index: 2, kind: input, shape index: {}]
  %s3 = inlined_call_operand.hbm [shape: f32[128,128], index: 3, kind: input, shape index: {}]
  %s4 = inlined_call_operand.vmem [shape: f32[1,128], index: 4, kind: input, shape index: {}]
  %s5 = inlined_call_operand.hbm [shape: f32[128,128], index: 5, kind: input, shape index: {}]
  %s6 = inlined_call_operand.vmem [shape: f32[1,128], index: 6, kind: input, shape index: {}]
  %s7 = inlined_call_operand.vmem [shape: f32[8,128], index: 7, kind: output, shape index: {}]
  %s8 = sld [smem:[#allocation0]]
  $region50: #{_forward.1} parent=0
    _
  %s10 = ssub.s32 1, %s8
  %s11 = scalar_select 0, %s10, %s8
  $region1: #{_forward.1} parent=0
    #allocation2 [shape = 'u8[65536]{0}', space=vmem, size = 0x10000, scoped, tag = 'input window, operand 1, single buffered']
    #allocation3 [shape = 's32[1]{0}', space=sflag, size = 0x4, scoped, tag = 'scoped memory for _forward.1']
    #allocation4 [shape = 'u8[65536]{0}', space=vmem, size = 0x10000, scoped, tag = 'input window, operand 3, single buffered']
    #allocation5 [shape = 's32[1]{0}', space=sflag, size = 0x4, scoped, tag = 'scoped memory for _forward.1']
    #allocation6 [shape = 'u8[65536]{0}', space=vmem, size = 0x10000, scoped, tag = 'input window, operand 5, single buffered']
    %12 = vsyncpa [#allocation3], 0
    %13 = vsyncpa [#allocation5], 0
    // Predicated region
    $region2: #{_forward.1} parent=1 // pred_check
      _
    $region3: #{_forward.1} parent=1 // pred_check_branch
      %15 = sbr.rel (0) target = $region5
    $region4: #{_forward.1} parent=1 // pred_region
      _
    $region5: #{_forward.1} parent=1 // pred_fallthru
      _
    // Predicated region
    $region6: #{_forward.1} parent=1 // pred_check
      _
    $region7: #{_forward.1} parent=1 // pred_check_branch
      %17 = sbr.rel (0) target = $region9
    $region8: #{_forward.1} parent=1 // pred_region
      %s19 = ssub.s32 2048, 2048
      %20 = vsyncadd [#allocation3], %s19
      %s21 = sshll.u32 [#allocation2], 4
      %s22 = int_to_ptr.vmem [resolvable:$true] %s21
      %27 = dma.hbm_to_vmem [thread:$0]  %s1, 2048, %s22, [#allocation3], 128, 128, 8
    $region9: #{_forward.1} parent=1 // pred_fallthru
      _
    // Predicated region
    $region10: #{_forward.1} parent=1 // pred_check
      _
    $region11: #{_forward.1} parent=1 // pred_check_branch
      %29 = sbr.rel (0) target = $region13
    $region12: #{_forward.1} parent=1 // pred_region
      _
    $region13: #{_forward.1} parent=1 // pred_fallthru
      _
    // Predicated region
    $region14: #{_forward.1} parent=1 // pred_check
      _
    $region15: #{_forward.1} parent=1 // pred_check_branch
      %31 = sbr.rel (0) target = $region17
    $region16: #{_forward.1} parent=1 // pred_region
      %s33 = ssub.s32 2048, 2048
      %34 = vsyncadd [#allocation5], %s33
      %s35 = sshll.u32 [#allocation4], 4
      %s36 = int_to_ptr.vmem [resolvable:$true] %s35
      %41 = dma.hbm_to_vmem [thread:$0]  %s3, 2048, %s36, [#allocation5], 128, 128, 8
    $region17: #{_forward.1} parent=1 // pred_fallthru
      _
    // Predicated region
    $region18: #{_forward.1} parent=1 // pred_check
      _
    $region19: #{_forward.1} parent=1 // pred_check_branch
      %43 = sbr.rel (0) target = $region21
    $region20: #{_forward.1} parent=1 // pred_region
      _
    $region21: #{_forward.1} parent=1 // pred_fallthru
      _
    // Predicated region
    $region22: #{_forward.1} parent=1 // pred_check
      _
    $region23: #{_forward.1} parent=1 // pred_check_branch
      %45 = sbr.rel (0) target = $region25
    $region24: #{_forward.1} parent=1 // pred_region
      %s47 = ssub.s32 2048, 2048
      %48 = vsyncadd [#allocation5], %s47
      %s49 = sshll.u32 [#allocation6], 4
      %s50 = int_to_ptr.vmem [resolvable:$true] %s49
      %55 = dma.hbm_to_vmem [thread:$0]  %s5, 2048, %s50, [#allocation5], 128, 128, 8
    $region25: #{_forward.1} parent=1 // pred_fallthru
      _
    // Predicated region
    $region26: #{_forward.1} parent=1 // pred_check
      _
    $region27: #{_forward.1} parent=1 // pred_check_branch
      %57 = sbr.rel (0) target = $region29
    $region28: #{_forward.1} parent=1 // pred_region
      _
    $region29: #{_forward.1} parent=1 // pred_fallthru
      _
    // Predicated region
    $region30: #{_forward.1} parent=1 // pred_check
      _
    $region31: #{_forward.1} parent=1 // pred_check_branch
      %59 = sbr.rel (0) target = $region33
    $region32: #{_forward.1} parent=1 // pred_region
      %60 = dma.done [#allocation3], 2048
    $region33: #{_forward.1} parent=1 // pred_fallthru
      _
    // Predicated region
    $region34: #{_forward.1} parent=1 // pred_check
      _
    $region35: #{_forward.1} parent=1 // pred_check_branch
      %62 = sbr.rel (0) target = $region37
    $region36: #{_forward.1} parent=1 // pred_region
      %63 = dma.done [#allocation5], 2048
    $region37: #{_forward.1} parent=1 // pred_fallthru
      _
    // Predicated region
    $region38: #{_forward.1} parent=1 // pred_check
      _
    $region39: #{_forward.1} parent=1 // pred_check_branch
      %65 = sbr.rel (0) target = $region41
    $region40: #{_forward.1} parent=1 // pred_region
      %66 = dma.done [#allocation5], 2048
    $region41: #{_forward.1} parent=1 // pred_fallthru
      _
    %v67 = vld [vmem:[%s0] sm:$0xff]
    %v68 = vld [vmem:[#allocation2] sm:$0xff]
    %v69 = vld [vmem:[#allocation2 + $0x8] sm:$0xff]
    %v70 = vld [vmem:[#allocation2 + $0x10] sm:$0xff]
    %v71 = vld [vmem:[#allocation2 + $0x18] sm:$0xff]
    %v72 = vld [vmem:[#allocation2 + $0x20] sm:$0xff]
    %v73 = vld [vmem:[#allocation2 + $0x28] sm:$0xff]
    %v74 = vld [vmem:[#allocation2 + $0x30] sm:$0xff]
    %v75 = vld [vmem:[#allocation2 + $0x38] sm:$0xff]
    %v76 = vld [vmem:[#allocation2 + $0x40] sm:$0xff]
    %v77 = vld [vmem:[#allocation2 + $0x48] sm:$0xff]
    %v78 = vld [vmem:[#allocation2 + $0x50] sm:$0xff]
    %v79 = vld [vmem:[#allocation2 + $0x58] sm:$0xff]
    %v80 = vld [vmem:[#allocation2 + $0x60] sm:$0xff]
    %v81 = vld [vmem:[#allocation2 + $0x68] sm:$0xff]
    %v82 = vld [vmem:[#allocation2 + $0x70] sm:$0xff]
    %v83 = vld [vmem:[#allocation2 + $0x78] sm:$0xff]
    %v84 = vld [vmem:[%s2] sm:$0x1]
    %v86 = vlaneseq
    %v87 = vshrl.u32 %v86, 7
    %v88 = vsub.s32 0, %v87
    %v89 = vrot.slane %v84, %v88
    %91 = vmatprep.subr.mxu0 0.0
    %92 = vmatpush1.msra.mxu0 %v83
    %93 = vmatprep.subr.mxu0 0.0
    %94 = vmatpush1.msra.mxu0 %v82
    %95 = vmatprep.subr.mxu0 0.0
    %96 = vmatpush1.msra.mxu0 %v81
    %97 = vmatprep.subr.mxu0 0.0
    %98 = vmatpush1.msra.mxu0 %v80
    %99 = vmatprep.subr.mxu0 0.0
    %100 = vmatpush1.msra.mxu0 %v79
    %101 = vmatprep.subr.mxu0 0.0
    %102 = vmatpush1.msra.mxu0 %v78
    %103 = vmatprep.subr.mxu0 0.0
    %104 = vmatpush1.msra.mxu0 %v77
    %105 = vmatprep.subr.mxu0 0.0
    %106 = vmatpush1.msra.mxu0 %v76
    %107 = vmatprep.subr.mxu0 0.0
    %108 = vmatpush1.msra.mxu0 %v75
    %109 = vmatprep.subr.mxu0 0.0
    %110 = vmatpush1.msra.mxu0 %v74
    %111 = vmatprep.subr.mxu0 0.0
    %112 = vmatpush1.msra.mxu0 %v73
    %113 = vmatprep.subr.mxu0 0.0
    %114 = vmatpush1.msra.mxu0 %v72
    %115 = vmatprep.subr.mxu0 0.0
    %116 = vmatpush1.msra.mxu0 %v71
    %117 = vmatprep.subr.mxu0 0.0
    %118 = vmatpush1.msra.mxu0 %v70
    %119 = vmatprep.subr.mxu0 0.0
    %120 = vmatpush1.msra.mxu0 %v69
    %121 = vmatprep.subr.mxu0 0.0
    %122 = vmatpush1.msra.mxu0 %v68
    %123 = vmatprep.subr.mxu0 0.0
    %124 = vmatpush2.msra.mxu0 0.0
    %125 = vmatprep.subr.mxu0 0.0
    %126 = vmatpush2.msra.mxu0 0.0
    %127 = vmatprep.subr.mxu0 0.0
    %128 = vmatpush2.msra.mxu0 0.0
    %129 = vmatprep.subr.mxu0 0.0
    %130 = vmatpush2.msra.mxu0 0.0
    %131 = vmatprep.subr.mxu0 0.0
    %132 = vmatpush2.msra.mxu0 0.0
    %133 = vmatprep.subr.mxu0 0.0
    %134 = vmatpush2.msra.mxu0 0.0
    %135 = vmatprep.subr.mxu0 0.0
    %136 = vmatpush2.msra.mxu0 0.0
    %137 = vmatprep.subr.mxu0 0.0
    %138 = vmatpush2.msra.mxu0 0.0
    %139 = vmatprep.subr.mxu0 0.0
    %140 = vmatpush2.msra.mxu0 0.0
    %141 = vmatprep.subr.mxu0 0.0
    %142 = vmatpush2.msra.mxu0 0.0
    %143 = vmatprep.subr.mxu0 0.0
    %144 = vmatpush2.msra.mxu0 0.0
    %145 = vmatprep.subr.mxu0 0.0
    %146 = vmatpush2.msra.mxu0 0.0
    %147 = vmatprep.subr.mxu0 0.0
    %148 = vmatpush2.msra.mxu0 0.0
    %149 = vmatprep.subr.mxu0 0.0
    %150 = vmatpush2.msra.mxu0 0.0
    %151 = vmatprep.subr.mxu0 0.0
    %152 = vmatpush2.msra.mxu0 0.0
    %153 = vmatprep.subr.mxu0 0.0
    %154 = vmatpush2.msra.mxu0 0.0
    %155 = vmatprep.mubr.f32.mxu0 0.0
    %156 = vmatmul.mubr.f32.gmra.mxu0 %v67
    %v157 = vpop.f32.mrf.mxu0
    %v158 = vadd.f32 %v89, %v157
    %v159 = vpop.f32.mrf.mxu0
    %160 = vdwg.mxu0
    %v161 = vtanh.pop %v158
    %v162 = vld [vmem:[#allocation4] sm:$0xff]
    %v163 = vld [vmem:[#allocation4 + $0x8] sm:$0xff]
    %v164 = vld [vmem:[#allocation4 + $0x10] sm:$0xff]
    %v165 = vld [vmem:[#allocation4 + $0x18] sm:$0xff]
    %v166 = vld [vmem:[#allocation4 + $0x20] sm:$0xff]
    %v167 = vld [vmem:[#allocation4 + $0x28] sm:$0xff]
    %v168 = vld [vmem:[#allocation4 + $0x30] sm:$0xff]
    %v169 = vld [vmem:[#allocation4 + $0x38] sm:$0xff]
    %v170 = vld [vmem:[#allocation4 + $0x40] sm:$0xff]
    %v171 = vld [vmem:[#allocation4 + $0x48] sm:$0xff]
    %v172 = vld [vmem:[#allocation4 + $0x50] sm:$0xff]
    %v173 = vld [vmem:[#allocation4 + $0x58] sm:$0xff]
    %v174 = vld [vmem:[#allocation4 + $0x60] sm:$0xff]
    %v175 = vld [vmem:[#allocation4 + $0x68] sm:$0xff]
    %v176 = vld [vmem:[#allocation4 + $0x70] sm:$0xff]
    %v177 = vld [vmem:[#allocation4 + $0x78] sm:$0xff]
    %v178 = vld [vmem:[%s4] sm:$0x1]
    %v180 = vlaneseq
    %v181 = vshrl.u32 %v180, 7
    %v182 = vsub.s32 0, %v181
    %v183 = vrot.slane %v178, %v182
    %185 = vmatprep.subr.mxu0 0.0
    %186 = vmatpush1.msra.mxu0 %v177
    %187 = vmatprep.subr.mxu0 0.0
    %188 = vmatpush1.msra.mxu0 %v176
    %189 = vmatprep.subr.mxu0 0.0
    %190 = vmatpush1.msra.mxu0 %v175
    %191 = vmatprep.subr.mxu0 0.0
    %192 = vmatpush1.msra.mxu0 %v174
    %193 = vmatprep.subr.mxu0 0.0
    %194 = vmatpush1.msra.mxu0 %v173
    %195 = vmatprep.subr.mxu0 0.0
    %196 = vmatpush1.msra.mxu0 %v172
    %197 = vmatprep.subr.mxu0 0.0
    %198 = vmatpush1.msra.mxu0 %v171
    %199 = vmatprep.subr.mxu0 0.0
    %200 = vmatpush1.msra.mxu0 %v170
    %201 = vmatprep.subr.mxu0 0.0
    %202 = vmatpush1.msra.mxu0 %v169
    %203 = vmatprep.subr.mxu0 0.0
    %204 = vmatpush1.msra.mxu0 %v168
    %205 = vmatprep.subr.mxu0 0.0
    %206 = vmatpush1.msra.mxu0 %v167
    %207 = vmatprep.subr.mxu0 0.0
    %208 = vmatpush1.msra.mxu0 %v166
    %209 = vmatprep.subr.mxu0 0.0
    %210 = vmatpush1.msra.mxu0 %v165
    %211 = vmatprep.subr.mxu0 0.0
    %212 = vmatpush1.msra.mxu0 %v164
    %213 = vmatprep.subr.mxu0 0.0
    %214 = vmatpush1.msra.mxu0 %v163
    %215 = vmatprep.subr.mxu0 0.0
    %216 = vmatpush1.msra.mxu0 %v162
    %217 = vmatprep.subr.mxu0 0.0
    %218 = vmatpush2.msra.mxu0 0.0
    %219 = vmatprep.subr.mxu0 0.0
    %220 = vmatpush2.msra.mxu0 0.0
    %221 = vmatprep.subr.mxu0 0.0
    %222 = vmatpush2.msra.mxu0 0.0
    %223 = vmatprep.subr.mxu0 0.0
    %224 = vmatpush2.msra.mxu0 0.0
    %225 = vmatprep.subr.mxu0 0.0
    %226 = vmatpush2.msra.mxu0 0.0
    %227 = vmatprep.subr.mxu0 0.0
    %228 = vmatpush2.msra.mxu0 0.0
    %229 = vmatprep.subr.mxu0 0.0
    %230 = vmatpush2.msra.mxu0 0.0
    %231 = vmatprep.subr.mxu0 0.0
    %232 = vmatpush2.msra.mxu0 0.0
    %233 = vmatprep.subr.mxu0 0.0
    %234 = vmatpush2.msra.mxu0 0.0
    %235 = vmatprep.subr.mxu0 0.0
    %236 = vmatpush2.msra.mxu0 0.0
    %237 = vmatprep.subr.mxu0 0.0
    %238 = vmatpush2.msra.mxu0 0.0
    %239 = vmatprep.subr.mxu0 0.0
    %240 = vmatpush2.msra.mxu0 0.0
    %241 = vmatprep.subr.mxu0 0.0
    %242 = vmatpush2.msra.mxu0 0.0
    %243 = vmatprep.subr.mxu0 0.0
    %244 = vmatpush2.msra.mxu0 0.0
    %245 = vmatprep.subr.mxu0 0.0
    %246 = vmatpush2.msra.mxu0 0.0
    %247 = vmatprep.subr.mxu0 0.0
    %248 = vmatpush2.msra.mxu0 0.0
    %249 = vmatprep.mubr.f32.mxu0 0.0
    %250 = vmatmul.mubr.f32.gmra.mxu0 %v161
    %v251 = vpop.f32.mrf.mxu0
    %v252 = vadd.f32 %v183, %v251
    %v253 = vpop.f32.mrf.mxu0
    %254 = vdwg.mxu0
    %v255 = vtanh.pop %v252
    %v256 = vld [vmem:[#allocation6] sm:$0xff]
    %v257 = vld [vmem:[#allocation6 + $0x8] sm:$0xff]
    %v258 = vld [vmem:[#allocation6 + $0x10] sm:$0xff]
    %v259 = vld [vmem:[#allocation6 + $0x18] sm:$0xff]
    %v260 = vld [vmem:[#allocation6 + $0x20] sm:$0xff]
    %v261 = vld [vmem:[#allocation6 + $0x28] sm:$0xff]
    %v262 = vld [vmem:[#allocation6 + $0x30] sm:$0xff]
    %v263 = vld [vmem:[#allocation6 + $0x38] sm:$0xff]
    %v264 = vld [vmem:[#allocation6 + $0x40] sm:$0xff]
    %v265 = vld [vmem:[#allocation6 + $0x48] sm:$0xff]
    %v266 = vld [vmem:[#allocation6 + $0x50] sm:$0xff]
    %v267 = vld [vmem:[#allocation6 + $0x58] sm:$0xff]
    %v268 = vld [vmem:[#allocation6 + $0x60] sm:$0xff]
    %v269 = vld [vmem:[#allocation6 + $0x68] sm:$0xff]
    %v270 = vld [vmem:[#allocation6 + $0x70] sm:$0xff]
    %v271 = vld [vmem:[#allocation6 + $0x78] sm:$0xff]
    %v272 = vld [vmem:[%s6] sm:$0x1]
    %v274 = vlaneseq
    %v275 = vshrl.u32 %v274, 7
    %v276 = vsub.s32 0, %v275
    %v277 = vrot.slane %v272, %v276
    %279 = vmatprep.subr.mxu0 0.0
    %280 = vmatpush1.msra.mxu0 %v271
    %281 = vmatprep.subr.mxu0 0.0
    %282 = vmatpush1.msra.mxu0 %v270
    %283 = vmatprep.subr.mxu0 0.0
    %284 = vmatpush1.msra.mxu0 %v269
    %285 = vmatprep.subr.mxu0 0.0
    %286 = vmatpush1.msra.mxu0 %v268
    %287 = vmatprep.subr.mxu0 0.0
    %288 = vmatpush1.msra.mxu0 %v267
    %289 = vmatprep.subr.mxu0 0.0
    %290 = vmatpush1.msra.mxu0 %v266
    %291 = vmatprep.subr.mxu0 0.0
    %292 = vmatpush1.msra.mxu0 %v265
    %293 = vmatprep.subr.mxu0 0.0
    %294 = vmatpush1.msra.mxu0 %v264
    %295 = vmatprep.subr.mxu0 0.0
    %296 = vmatpush1.msra.mxu0 %v263
    %297 = vmatprep.subr.mxu0 0.0
    %298 = vmatpush1.msra.mxu0 %v262
    %299 = vmatprep.subr.mxu0 0.0
    %300 = vmatpush1.msra.mxu0 %v261
    %301 = vmatprep.subr.mxu0 0.0
    %302 = vmatpush1.msra.mxu0 %v260
    %303 = vmatprep.subr.mxu0 0.0
    %304 = vmatpush1.msra.mxu0 %v259
    %305 = vmatprep.subr.mxu0 0.0
    %306 = vmatpush1.msra.mxu0 %v258
    %307 = vmatprep.subr.mxu0 0.0
    %308 = vmatpush1.msra.mxu0 %v257
    %309 = vmatprep.subr.mxu0 0.0
    %310 = vmatpush1.msra.mxu0 %v256
    %311 = vmatprep.subr.mxu0 0.0
    %312 = vmatpush2.msra.mxu0 0.0
    %313 = vmatprep.subr.mxu0 0.0
    %314 = vmatpush2.msra.mxu0 0.0
    %315 = vmatprep.subr.mxu0 0.0
    %316 = vmatpush2.msra.mxu0 0.0
    %317 = vmatprep.subr.mxu0 0.0
    %318 = vmatpush2.msra.mxu0 0.0
    %319 = vmatprep.subr.mxu0 0.0
    %320 = vmatpush2.msra.mxu0 0.0
    %321 = vmatprep.subr.mxu0 0.0
    %322 = vmatpush2.msra.mxu0 0.0
    %323 = vmatprep.subr.mxu0 0.0
    %324 = vmatpush2.msra.mxu0 0.0
    %325 = vmatprep.subr.mxu0 0.0
    %326 = vmatpush2.msra.mxu0 0.0
    %327 = vmatprep.subr.mxu0 0.0
    %328 = vmatpush2.msra.mxu0 0.0
    %329 = vmatprep.subr.mxu0 0.0
    %330 = vmatpush2.msra.mxu0 0.0
    %331 = vmatprep.subr.mxu0 0.0
    %332 = vmatpush2.msra.mxu0 0.0
    %333 = vmatprep.subr.mxu0 0.0
    %334 = vmatpush2.msra.mxu0 0.0
    %335 = vmatprep.subr.mxu0 0.0
    %336 = vmatpush2.msra.mxu0 0.0
    %337 = vmatprep.subr.mxu0 0.0
    %338 = vmatpush2.msra.mxu0 0.0
    %339 = vmatprep.subr.mxu0 0.0
    %340 = vmatpush2.msra.mxu0 0.0
    %341 = vmatprep.subr.mxu0 0.0
    %342 = vmatpush2.msra.mxu0 0.0
    %343 = vmatprep.mubr.f32.mxu0 0.0
    %344 = vmatmul.mubr.f32.gmra.mxu0 %v255
    %v345 = vpop.f32.mrf.mxu0
    %v346 = vadd.f32 %v277, %v345
    %v347 = vpop.f32.mrf.mxu0
    %348 = vdwg.mxu0
    %349 = vst [vmem:[%s7] sm:$0xff] %v346
    // Predicated region
    $region42: #{_forward.1} parent=1 // pred_check
      _
    $region43: #{_forward.1} parent=1 // pred_check_branch
      %351 = sbr.rel (0) target = $region45
    $region44: #{_forward.1} parent=1 // pred_region
      _
    $region45: #{_forward.1} parent=1 // pred_fallthru
      _
    // Predicated region
    $region46: #{_forward.1} parent=1 // pred_check
      _
    $region47: #{_forward.1} parent=1 // pred_check_branch
      %353 = sbr.rel (0) target = $region49
    $region48: #{_forward.1} parent=1 // pred_region
      _
    $region49: #{_forward.1} parent=1 // pred_fallthru
      _
    %354 = vsyncpa [#allocation3], 1
    %355 = vsyncpa [#allocation5], 1

</llo_original>
